<compile_context>
chip_gen: v7x
topology: tpu7x:2x2x1
jax: 0.10.0
libtpu: 0.0.40
codegen_flags: <defaults>
</compile_context>

<pallas_src>
import functools

import jax
import jax.numpy as jnp
from jax import lax
from jax.experimental import pallas as pl
from jax.experimental.pallas import tpu as pltpu

BN_EPS = 1e-5


def _round_up(n, m):
    return ((n + m - 1) // m) * m


def projector_kernel(x_ref, w1_ref, bn1_ref, w2_ref, bn2_ref, out_ref, acc_ref,
                     *, inv_batch):
    k = pl.program_id(0)

    @pl.when(k == 0)
    def _():
        acc_ref[...] = jnp.zeros_like(acc_ref)

    # ---- Linear1, feature tile (bias dropped: cancelled by BN1 mean) --------
    h = jnp.dot(x_ref[...], w1_ref[...], preferred_element_type=jnp.float32)

    # ---- BatchNorm1d (training mode) + ReLU, fused scale/shift, 1-pass stats
    mean1 = jnp.sum(h, axis=0, keepdims=True) * inv_batch
    ex2 = jnp.sum(h * h, axis=0, keepdims=True) * inv_batch
    var1 = jnp.maximum(ex2 - mean1 * mean1, 0.0)
    scale1 = bn1_ref[0:1, :] * lax.rsqrt(var1 + BN_EPS)
    shift1 = bn1_ref[1:2, :] - mean1 * scale1
    h = jnp.maximum(h * scale1 + shift1, 0.0)

    # ---- Linear2, K-tiled accumulation into f32 scratch (bias dropped) ------
    acc_ref[...] += jnp.dot(h.astype(w2_ref.dtype), w2_ref[...],
                            preferred_element_type=jnp.float32)

    # ---- Final BatchNorm1d + writeback on the last K tile --------------------
    @pl.when(k == pl.num_programs(0) - 1)
    def _():
        y = acc_ref[...]
        mean2 = jnp.sum(y, axis=0, keepdims=True) * inv_batch
        ey2 = jnp.sum(y * y, axis=0, keepdims=True) * inv_batch
        var2 = jnp.maximum(ey2 - mean2 * mean2, 0.0)
        scale2 = bn2_ref[0:1, :] * lax.rsqrt(var2 + BN_EPS)
        shift2 = bn2_ref[1:2, :] - mean2 * scale2
        out_ref[...] = (y * scale2 + shift2).astype(out_ref.dtype)


def projector_forward(x, params, *, tile_n=512, compute_dtype=jnp.float32):
    """x: (B, ...) flattened to (B, D) like torch's x.view(B, -1)."""
    B = x.shape[0]
    x2d = x.reshape(B, -1)
    D = x2d.shape[1]
    L = params["w2"].shape[1]

    # Lane-dense padding (multiples of 128) and feature/K tile size.
    tn = min(tile_n, _round_up(D, 128))
    Dp = _round_up(D, tn)
    Lp = _round_up(L, 128)

    cdt = jnp.dtype(compute_dtype)
    xp = jnp.pad(x2d.astype(cdt), ((0, 0), (0, Dp - D)))
    w1 = jnp.pad(params["w1"].astype(cdt), ((0, Dp - D), (0, Dp - D)))
    w2 = jnp.pad(params["w2"].astype(cdt), ((0, Dp - D), (0, Lp - L)))
    bn1 = jnp.concatenate([
        jnp.pad(params["g1"], ((0, 0), (0, Dp - D)), constant_values=1.0),
        jnp.pad(params["be1"], ((0, 0), (0, Dp - D)))], axis=0).astype(jnp.float32)
    bn2 = jnp.concatenate([
        jnp.pad(params["g2"], ((0, 0), (0, Lp - L)), constant_values=1.0),
        jnp.pad(params["be2"], ((0, 0), (0, Lp - L)))], axis=0).astype(jnp.float32)

    n_k = Dp // tn

    # Explicit scoped-VMEM budget for the actual resident footprint.
    bytes_c = cdt.itemsize
    vmem_bytes = (B * Dp * bytes_c              # x (resident across the grid)
                  + 2 * Dp * tn * bytes_c       # w1 tile (double-buffered)
                  + 2 * tn * Lp * bytes_c       # w2 tile (double-buffered)
                  + 2 * 2 * (tn + Lp) * 4       # gamma/beta slabs
                  + 3 * B * Lp * 4              # out block + f32 accumulator
                  + (4 << 20))                  # headroom
    vmem_limit = int(min(max(vmem_bytes, 16 << 20), 56 << 20))

    kernel = functools.partial(projector_kernel, inv_batch=1.0 / B)

    # TODO(synk): for very large B, additionally tile the batch and carry
    # per-feature sum / sum-of-squares accumulators across B tiles.
    out_padded = pl.pallas_call(
        kernel,
        out_shape=jax.ShapeDtypeStruct((B, Lp), jnp.float32),
        grid_spec=pltpu.PrefetchScalarGridSpec(
            num_scalar_prefetch=0,
            grid=(n_k,),
            in_specs=[
                pl.BlockSpec((B, Dp), lambda k: (0, 0)),    # x (whole batch)
                pl.BlockSpec((Dp, tn), lambda k: (0, k)),   # w1 feature tile
                pl.BlockSpec((2, tn), lambda k: (0, k)),    # gamma1/beta1 tile
                pl.BlockSpec((tn, Lp), lambda k: (k, 0)),   # w2 K tile
                pl.BlockSpec((2, Lp), lambda k: (0, 0)),    # gamma2/beta2
            ],
            out_specs=pl.BlockSpec((B, Lp), lambda k: (0, 0)),
            scratch_shapes=[pltpu.VMEM((B, Lp), jnp.float32)],
        ),
        compiler_params=pltpu.CompilerParams(
            dimension_semantics=("arbitrary",),   # K/reduction axis
            vmem_limit_bytes=vmem_limit,
        ),
    )(xp, w1, bn1, w2, bn2)

    return out_padded[:, :L]


def init_params(key, emb_size, magic, latent_space_size):
    """PyTorch-style uniform fan-in init. b1/b2 exist only for the reference:
    they are mathematically cancelled by the training-mode BatchNorms."""
    D = emb_size * magic
    L = latent_space_size
    k1, k2, k3, k4 = jax.random.split(key, 4)
    bound = 1.0 / jnp.sqrt(D)
    return {
        # stored as (in_features, out_features)
        "w1": jax.random.uniform(k1, (D, D), jnp.float32, -bound, bound),
        "b1": jax.random.uniform(k2, (1, D), jnp.float32, -bound, bound),
        "g1": jnp.ones((1, D), jnp.float32),
        "be1": jnp.zeros((1, D), jnp.float32),
        "w2": jax.random.uniform(k3, (D, L), jnp.float32, -bound, bound),
        "b2": jax.random.uniform(k4, (1, L), jnp.float32, -bound, bound),
        "g2": jnp.ones((1, L), jnp.float32),
        "be2": jnp.zeros((1, L), jnp.float32),
    }


def projector_reference(x, params):
    """Pure-JAX reference faithful to the PyTorch module (with Linear biases)."""
    x2d = x.reshape(x.shape[0], -1).astype(jnp.float32)
    h = x2d @ params["w1"] + params["b1"]
    m, v = jnp.mean(h, 0, keepdims=True), jnp.var(h, 0, keepdims=True)
    h = (h - m) / jnp.sqrt(v + BN_EPS) * params["g1"] + params["be1"]
    h = jnp.maximum(h, 0.0)
    y = h @ params["w2"] + params["b2"]
    m2, v2 = jnp.mean(y, 0, keepdims=True), jnp.var(y, 0, keepdims=True)
    return (y - m2) / jnp.sqrt(v2 + BN_EPS) * params["g2"] + params["be2"]


if __name__ == "__main__":
    # Small config consistent with the module's constructor:
    #   global_params  = {'embedding_size': 16, 'magic_constant_pre_train': 2}
    #   encoder_params = {'latent_space_size': 16}
    emb_size, magic, latent = 16, 2, 16
    B = 8

    key = jax.random.PRNGKey(0)
    kx, kp = jax.random.split(key)

    # Input shaped (B, magic, emb_size); forward flattens it to (B, emb*magic).
    x = jax.random.normal(kx, (B, magic, emb_size), jnp.float32)
    params = init_params(kp, emb_size, magic, latent)

    ref = projector_reference(x, params)

    # f32 path: must match the PyTorch-faithful reference tightly
    # (demonstrates that dropping the Linear biases is exact up to rounding).
    out_f32 = jax.block_until_ready(projector_forward(x, params))
    assert out_f32.shape == (B, latent)
    assert jnp.allclose(out_f32, ref, atol=1e-4, rtol=1e-4), "f32 mismatch vs reference"

    # bf16 MXU fast path (v6e/v7x throughput): looser numerical tolerance.
    out_bf16 = jax.block_until_ready(
        projector_forward(x, params, compute_dtype=jnp.bfloat16))
    assert out_bf16.shape == (B, latent)
    assert jnp.allclose(out_bf16, ref, atol=1e-1, rtol=1e-1), "bf16 mismatch vs reference"

    print("KERNEL_OK")
</pallas_src>

<mosaic_0001>
module attributes {stable_mosaic.version = 11 : i64} {
  func.func @projector_kernel(%arg0: i32, %arg1: memref<8x128xf32, #tpu.memory_space<vmem>>, %arg2: memref<128x128xf32, #tpu.memory_space<vmem>>, %arg3: memref<2x128xf32, #tpu.memory_space<vmem>>, %arg4: memref<128x128xf32, #tpu.memory_space<vmem>>, %arg5: memref<2x128xf32, #tpu.memory_space<vmem>>, %arg6: memref<8x128xf32, #tpu.memory_space<vmem>>, %arg7: memref<8x128xf32, #tpu.memory_space<vmem>>) attributes {dimension_semantics = [#tpu.dimension_semantics<arbitrary>], iteration_bounds = array<i64: 1>, scalar_prefetch = 0 : i64, scratch_operands = 1 : i64, tpu.core_type = #tpu.core_type<tc>, window_params = [{pipeline_mode = #tpu.pipeline_mode<synchronous>, transform_indices = @transform_0, window_bounds = array<i64: 8, 128>}, {transform_indices = @transform_1, window_bounds = array<i64: 128, 128>}, {transform_indices = @transform_2, window_bounds = array<i64: 2, 128>}, {transform_indices = @transform_3, window_bounds = array<i64: 128, 128>}, {pipeline_mode = #tpu.pipeline_mode<synchronous>, transform_indices = @transform_4, window_bounds = array<i64: 2, 128>}, {pipeline_mode = #tpu.pipeline_mode<synchronous>, transform_indices = @transform_5, window_bounds = array<i64: 8, 128>}]} {
    %c0_i32 = arith.constant 0 : i32
    %0 = arith.cmpi eq, %arg0, %c0_i32 : i32
    %1 = arith.extui %0 : i1 to i32
    %c0_i32_0 = arith.constant 0 : i32
    %2 = arith.cmpi ne, %1, %c0_i32_0 : i32
    scf.if %2 {
      %cst_23 = arith.constant 0.000000e+00 : f32
      %41 = vector.broadcast %cst_23 : f32 to vector<8x128xf32>
      %c0_24 = arith.constant 0 : index
      %c0_25 = arith.constant 0 : index
      %42 = vector.load %arg7[%c0_24, %c0_25] : memref<8x128xf32, #tpu.memory_space<vmem>>, vector<8x128xf32>
      tpu.vector_store %arg7[%c0_24, %c0_25], %41 {strides = array<i32>} : memref<8x128xf32, #tpu.memory_space<vmem>>, vector<8x128xf32>,
    } else {
    }
    %c0 = arith.constant 0 : index
    %c0_1 = arith.constant 0 : index
    %3 = vector.load %arg1[%c0, %c0_1] : memref<8x128xf32, #tpu.memory_space<vmem>>, vector<8x128xf32>
    %c0_2 = arith.constant 0 : index
    %c0_3 = arith.constant 0 : index
    %4 = vector.load %arg2[%c0_2, %c0_3] : memref<128x128xf32, #tpu.memory_space<vmem>>, vector<128x128xf32>
    %cst = arith.constant dense<0.000000e+00> : vector<8x128xf32>
    %5 = tpu.matmul %3, %4, %cst {dimension_numbers = #tpu.dot_dimension_numbers<[1], [0], [0], [1], [0, 0, 1, 1], [], []>} : vector<8x128xf32>, vector<128x128xf32>, vector<8x128xf32> -> vector<8x128xf32>
    %cst_4 = arith.constant dense<0.000000e+00> : vector<128xf32>
    %6 = vector.multi_reduction <add>, %5, %cst_4 [0] : vector<8x128xf32> to vector<128xf32>
    %7 = vector.shape_cast %6 : vector<128xf32> to vector<1x128xf32>
    %cst_5 = arith.constant 1.250000e-01 : f32
    %8 = vector.broadcast %cst_5 : f32 to vector<1x128xf32>
    %9 = arith.mulf %7, %8 : vector<1x128xf32>
    %10 = arith.mulf %5, %5 : vector<8x128xf32>
    %cst_6 = arith.constant dense<0.000000e+00> : vector<128xf32>
    %11 = vector.multi_reduction <add>, %10, %cst_6 [0] : vector<8x128xf32> to vector<128xf32>
    %12 = vector.shape_cast %11 : vector<128xf32> to vector<1x128xf32>
    %cst_7 = arith.constant 1.250000e-01 : f32
    %13 = vector.broadcast %cst_7 : f32 to vector<1x128xf32>
    %14 = arith.mulf %12, %13 : vector<1x128xf32>
    %15 = arith.mulf %9, %9 : vector<1x128xf32>
    %16 = arith.subf %14, %15 : vector<1x128xf32>
    %cst_8 = arith.constant 0.000000e+00 : f32
    %17 = vector.broadcast %cst_8 : f32 to vector<1x128xf32>
    %18 = arith.maximumf %16, %17 : vector<1x128xf32>
    %c0_9 = arith.constant 0 : index
    %c0_10 = arith.constant 0 : index
    %19 = vector.load %arg3[%c0_9, %c0_10] : memref<2x128xf32, #tpu.memory_space<vmem>>, vector<1x128xf32>
    %cst_11 = arith.constant 9.99999974E-6 : f32
    %20 = vector.broadcast %cst_11 : f32 to vector<1x128xf32>
    %21 = arith.addf %18, %20 : vector<1x128xf32>
    %22 = math.rsqrt %21 : vector<1x128xf32>
    %23 = arith.mulf %19, %22 : vector<1x128xf32>
    %c1 = arith.constant 1 : index
    %c0_12 = arith.constant 0 : index
    %24 = vector.load %arg3[%c1, %c0_12] : memref<2x128xf32, #tpu.memory_space<vmem>>, vector<1x128xf32>
    %25 = arith.mulf %9, %23 : vector<1x128xf32>
    %26 = arith.subf %24, %25 : vector<1x128xf32>
    %27 = vector.broadcast %23 : vector<1x128xf32> to vector<8x128xf32>
    %28 = arith.mulf %5, %27 : vector<8x128xf32>
    %29 = vector.broadcast %26 : vector<1x128xf32> to vector<8x128xf32>
    %30 = arith.addf %28, %29 : vector<8x128xf32>
    %cst_13 = arith.constant 0.000000e+00 : f32
    %31 = vector.broadcast %cst_13 : f32 to vector<8x128xf32>
    %32 = arith.maximumf %30, %31 : vector<8x128xf32>
    %c0_14 = arith.constant 0 : index
    %c0_15 = arith.constant 0 : index
    %33 = vector.load %arg7[%c0_14, %c0_15] : memref<8x128xf32, #tpu.memory_space<vmem>>, vector<8x128xf32>
    %c0_16 = arith.constant 0 : index
    %c0_17 = arith.constant 0 : index
    %34 = vector.load %arg4[%c0_16, %c0_17] : memref<128x128xf32, #tpu.memory_space<vmem>>, vector<128x128xf32>
    %cst_18 = arith.constant dense<0.000000e+00> : vector<8x128xf32>
    %35 = tpu.matmul %32, %34, %cst_18 {dimension_numbers = #tpu.dot_dimension_numbers<[1], [0], [0], [1], [0, 0, 1, 1], [], []>} : vector<8x128xf32>, vector<128x128xf32>, vector<8x128xf32> -> vector<8x128xf32>
    %36 = arith.addf %33, %35 : vector<8x128xf32>
    %c0_19 = arith.constant 0 : index
    %c0_20 = arith.constant 0 : index
    %37 = vector.load %arg7[%c0_19, %c0_20] : memref<8x128xf32, #tpu.memory_space<vmem>>, vector<8x128xf32>
    tpu.vector_store %arg7[%c0_19, %c0_20], %36 {strides = array<i32>} : memref<8x128xf32, #tpu.memory_space<vmem>>, vector<8x128xf32>,
    %c0_i32_21 = arith.constant 0 : i32
    %38 = arith.cmpi eq, %arg0, %c0_i32_21 : i32
    %39 = arith.extui %38 : i1 to i32
    %c0_i32_22 = arith.constant 0 : i32
    %40 = arith.cmpi ne, %39, %c0_i32_22 : i32
    scf.if %40 {
      %c0_23 = arith.constant 0 : index
      %c0_24 = arith.constant 0 : index
      %41 = vector.load %arg7[%c0_23, %c0_24] : memref<8x128xf32, #tpu.memory_space<vmem>>, vector<8x128xf32>
      %cst_25 = arith.constant dense<0.000000e+00> : vector<128xf32>
      %42 = vector.multi_reduction <add>, %41, %cst_25 [0] : vector<8x128xf32> to vector<128xf32>
      %43 = vector.shape_cast %42 : vector<128xf32> to vector<1x128xf32>
      %cst_26 = arith.constant 1.250000e-01 : f32
      %44 = vector.broadcast %cst_26 : f32 to vector<1x128xf32>
      %45 = arith.mulf %43, %44 : vector<1x128xf32>
      %46 = arith.mulf %41, %41 : vector<8x128xf32>
      %cst_27 = arith.constant dense<0.000000e+00> : vector<128xf32>
      %47 = vector.multi_reduction <add>, %46, %cst_27 [0] : vector<8x128xf32> to vector<128xf32>
      %48 = vector.shape_cast %47 : vector<128xf32> to vector<1x128xf32>
      %cst_28 = arith.constant 1.250000e-01 : f32
      %49 = vector.broadcast %cst_28 : f32 to vector<1x128xf32>
      %50 = arith.mulf %48, %49 : vector<1x128xf32>
      %51 = arith.mulf %45, %45 : vector<1x128xf32>
      %52 = arith.subf %50, %51 : vector<1x128xf32>
      %cst_29 = arith.constant 0.000000e+00 : f32
      %53 = vector.broadcast %cst_29 : f32 to vector<1x128xf32>
      %54 = arith.maximumf %52, %53 : vector<1x128xf32>
      %c0_30 = arith.constant 0 : index
      %c0_31 = arith.constant 0 : index
      %55 = vector.load %arg5[%c0_30, %c0_31] : memref<2x128xf32, #tpu.memory_space<vmem>>, vector<1x128xf32>
      %cst_32 = arith.constant 9.99999974E-6 : f32
      %56 = vector.broadcast %cst_32 : f32 to vector<1x128xf32>
      %57 = arith.addf %54, %56 : vector<1x128xf32>
      %58 = math.rsqrt %57 : vector<1x128xf32>
      %59 = arith.mulf %55, %58 : vector<1x128xf32>
      %c1_33 = arith.constant 1 : index
      %c0_34 = arith.constant 0 : index
      %60 = vector.load %arg5[%c1_33, %c0_34] : memref<2x128xf32, #tpu.memory_space<vmem>>, vector<1x128xf32>
      %61 = arith.mulf %45, %59 : vector<1x128xf32>
      %62 = arith.subf %60, %61 : vector<1x128xf32>
      %63 = vector.broadcast %59 : vector<1x128xf32> to vector<8x128xf32>
      %64 = arith.mulf %41, %63 : vector<8x128xf32>
      %65 = vector.broadcast %62 : vector<1x128xf32> to vector<8x128xf32>
      %66 = arith.addf %64, %65 : vector<8x128xf32>
      %c0_35 = arith.constant 0 : index
      %c0_36 = arith.constant 0 : index
      %67 = vector.load %arg6[%c0_35, %c0_36] : memref<8x128xf32, #tpu.memory_space<vmem>>, vector<8x128xf32>
      tpu.vector_store %arg6[%c0_35, %c0_36], %66 {strides = array<i32>} : memref<8x128xf32, #tpu.memory_space<vmem>>, vector<8x128xf32>,
    } else {
    }
    return
  }
  func.func @transform_0(%arg0: i32) -> (i32, i32) {
    %c0_i32 = arith.constant 0 : i32
    %c0_i32_0 = arith.constant 0 : i32
    %c0_i32_1 = arith.constant 0 : i32
    return %c0_i32, %c0_i32_0 : i32, i32
  }
  func.func @transform_1(%arg0: i32) -> (i32, i32) {
    %c0_i32 = arith.constant 0 : i32
    %c0_i32_0 = arith.constant 0 : i32
    return %c0_i32, %arg0 : i32, i32
  }
  func.func @transform_2(%arg0: i32) -> (i32, i32) {
    %c0_i32 = arith.constant 0 : i32
    %c0_i32_0 = arith.constant 0 : i32
    return %c0_i32, %arg0 : i32, i32
  }
  func.func @transform_3(%arg0: i32) -> (i32, i32) {
    %c0_i32 = arith.constant 0 : i32
    %c0_i32_0 = arith.constant 0 : i32
    return %arg0, %c0_i32 : i32, i32
  }
  func.func @transform_4(%arg0: i32) -> (i32, i32) {
    %c0_i32 = arith.constant 0 : i32
    %c0_i32_0 = arith.constant 0 : i32
    %c0_i32_1 = arith.constant 0 : i32
    return %c0_i32, %c0_i32_0 : i32, i32
  }
  func.func @transform_5(%arg0: i32) -> (i32, i32) {
    %c0_i32 = arith.constant 0 : i32
    %c0_i32_0 = arith.constant 0 : i32
    %c0_i32_1 = arith.constant 0 : i32
    return %c0_i32, %c0_i32_0 : i32, i32
  }
}

</mosaic_0001>

<llo_original>
// kernel: tpu_custom_call.1
$region0: #{tpu_custom_call.1}
  #allocation0 [shape = 'u32[]', space=smem, size = 0x4, offset = 0x4, fixed_abs, tag = 'smem constant byte address 0x4 - core index']
  #allocation1 [shape = 'u32[144,128]{1,0:T(1,128)}', space=vmem, size = 0x12000, scoped, tag = 'internal scratch']
  #allocation2 [shape = 'f32[8,128]{1,0:T(8,128)}', space=vmem, size = 0x1000, scoped, tag = 'scratch operand']
  %s0 = inlined_call_operand.hbm [shape: f32[8,128], index: 0, kind: input, shape index: {}]
  %s1 = inlined_call_operand.hbm [shape: f32[128,128], index: 1, kind: input, shape index: {}]
  %s2 = inlined_call_operand.vmem [shape: f32[2,128], index: 2, kind: input, shape index: {}]
  %s3 = inlined_call_operand.hbm [shape: f32[128,128], index: 3, kind: input, shape index: {}]
  %s4 = inlined_call_operand.vmem [shape: f32[2,128], index: 4, kind: input, shape index: {}]
  %s5 = inlined_call_operand.hbm [shape: f32[8,128], index: 5, kind: output, shape index: {}]
  %s6 = sld [smem:[#allocation0]]
  $region50: #{tpu_custom_call.1} parent=0
    _
  %s8 = ssub.s32 1, %s6
  %s9 = scalar_select 0, %s8, %s6
  $region1: #{tpu_custom_call.1} parent=0
    #allocation3 [shape = 'u8[4096]{0}', space=vmem, size = 0x1000, scoped, tag = 'input window, operand 0, single buffered']
    #allocation4 [shape = 's32[1]{0}', space=sflag, size = 0x4, scoped, tag = 'scoped memory for tpu_custom_call.1']
    #allocation5 [shape = 's32[1]{0}', space=sflag, size = 0x4, scoped, tag = 'scoped memory for tpu_custom_call.1']
    #allocation6 [shape = 'u8[65536]{0}', space=vmem, size = 0x10000, scoped, tag = 'input window, operand 1, single buffered']
    #allocation7 [shape = 's32[1]{0}', space=sflag, size = 0x4, scoped, tag = 'scoped memory for tpu_custom_call.1']
    #allocation8 [shape = 'u8[65536]{0}', space=vmem, size = 0x10000, scoped, tag = 'input window, operand 3, single buffered']
    #allocation9 [shape = 'u8[4096]{0}', space=vmem, size = 0x1000, scoped, tag = 'output window, operand 0, single buffered']
    %10 = vsyncpa [#allocation4], 0
    %11 = vsyncpa [#allocation7], 0
    %12 = vsyncpa [#allocation5], 0
    // Predicated region
    $region2: #{tpu_custom_call.1} parent=1 // pred_check
      _
    $region3: #{tpu_custom_call.1} parent=1 // pred_check_branch
      %14 = sbr.rel (0) target = $region5
    $region4: #{tpu_custom_call.1} parent=1 // pred_region
      %s16 = ssub.s32 128, 128
      %17 = vsyncadd [#allocation4], %s16
      %s19 = sshll.u32 [#allocation3], 4
      %s20 = int_to_ptr.vmem [resolvable:$true] %s19
      %22 = dma.hbm_to_vmem [thread:$0]  %s0, 128, %s20, [#allocation4]
    $region5: #{tpu_custom_call.1} parent=1 // pred_fallthru
      _
    // Predicated region
    $region6: #{tpu_custom_call.1} parent=1 // pred_check
      _
    $region7: #{tpu_custom_call.1} parent=1 // pred_check_branch
      %24 = sbr.rel (0) target = $region9
    $region8: #{tpu_custom_call.1} parent=1 // pred_region
      %s26 = ssub.s32 2048, 2048
      %27 = vsyncadd [#allocation7], %s26
      %s28 = sshll.u32 [#allocation6], 4
      %s29 = int_to_ptr.vmem [resolvable:$true] %s28
      %34 = dma.hbm_to_vmem [thread:$0]  %s1, 2048, %s29, [#allocation7], 128, 128, 8
    $region9: #{tpu_custom_call.1} parent=1 // pred_fallthru
      _
    // Predicated region
    $region10: #{tpu_custom_call.1} parent=1 // pred_check
      _
    $region11: #{tpu_custom_call.1} parent=1 // pred_check_branch
      %36 = sbr.rel (0) target = $region13
    $region12: #{tpu_custom_call.1} parent=1 // pred_region
      _
    $region13: #{tpu_custom_call.1} parent=1 // pred_fallthru
      _
    // Predicated region
    $region14: #{tpu_custom_call.1} parent=1 // pred_check
      _
    $region15: #{tpu_custom_call.1} parent=1 // pred_check_branch
      %38 = sbr.rel (0) target = $region17
    $region16: #{tpu_custom_call.1} parent=1 // pred_region
      %s40 = ssub.s32 2048, 2048
      %41 = vsyncadd [#allocation7], %s40
      %s42 = sshll.u32 [#allocation8], 4
      %s43 = int_to_ptr.vmem [resolvable:$true] %s42
      %48 = dma.hbm_to_vmem [thread:$0]  %s3, 2048, %s43, [#allocation7], 128, 128, 8
    $region17: #{tpu_custom_call.1} parent=1 // pred_fallthru
      _
    // Predicated region
    $region18: #{tpu_custom_call.1} parent=1 // pred_check
      _
    $region19: #{tpu_custom_call.1} parent=1 // pred_check_branch
      %50 = sbr.rel (0) target = $region21
    $region20: #{tpu_custom_call.1} parent=1 // pred_region
      _
    $region21: #{tpu_custom_call.1} parent=1 // pred_fallthru
      _
    // Predicated region
    $region22: #{tpu_custom_call.1} parent=1 // pred_check
      _
    $region23: #{tpu_custom_call.1} parent=1 // pred_check_branch
      %52 = sbr.rel (0) target = $region25
    $region24: #{tpu_custom_call.1} parent=1 // pred_region
      %53 = dma.done [#allocation4], 128
    $region25: #{tpu_custom_call.1} parent=1 // pred_fallthru
      _
    // Predicated region
    $region26: #{tpu_custom_call.1} parent=1 // pred_check
      _
    $region27: #{tpu_custom_call.1} parent=1 // pred_check_branch
      %55 = sbr.rel (0) target = $region29
    $region28: #{tpu_custom_call.1} parent=1 // pred_region
      %56 = dma.done [#allocation7], 2048
    $region29: #{tpu_custom_call.1} parent=1 // pred_fallthru
      _
    // Predicated region
    $region30: #{tpu_custom_call.1} parent=1 // pred_check
      _
    $region31: #{tpu_custom_call.1} parent=1 // pred_check_branch
      %58 = sbr.rel (0) target = $region33
    $region32: #{tpu_custom_call.1} parent=1 // pred_region
      %59 = dma.done [#allocation7], 2048
    $region33: #{tpu_custom_call.1} parent=1 // pred_fallthru
      _
    %p60 = scmp.eq.s32.totalorder 0, 0
    // Predicated region
    $region34: #{tpu_custom_call.1} parent=1 // pred_check
      %p61 = pneg %p60
    $region35: #{tpu_custom_call.1} parent=1 // pred_check_branch
      %63 = sbr.rel (%p61) target = $region37
    $region36: #{tpu_custom_call.1} parent=1 // pred_region
      %64 = vst [vmem:[#allocation2] sm:$0xff] 0.0
    $region37: #{tpu_custom_call.1} parent=1 // pred_fallthru
      _
    %v65 = vld [vmem:[#allocation3] sm:$0xff]
    %v66 = vld [vmem:[#allocation6] sm:$0xff]
    %v67 = vld [vmem:[#allocation6 + $0x8] sm:$0xff]
    %v68 = vld [vmem:[#allocation6 + $0x10] sm:$0xff]
    %v69 = vld [vmem:[#allocation6 + $0x18] sm:$0xff]
    %v70 = vld [vmem:[#allocation6 + $0x20] sm:$0xff]
    %v71 = vld [vmem:[#allocation6 + $0x28] sm:$0xff]
    %v72 = vld [vmem:[#allocation6 + $0x30] sm:$0xff]
    %v73 = vld [vmem:[#allocation6 + $0x38] sm:$0xff]
    %v74 = vld [vmem:[#allocation6 + $0x40] sm:$0xff]
    %v75 = vld [vmem:[#allocation6 + $0x48] sm:$0xff]
    %v76 = vld [vmem:[#allocation6 + $0x50] sm:$0xff]
    %v77 = vld [vmem:[#allocation6 + $0x58] sm:$0xff]
    %v78 = vld [vmem:[#allocation6 + $0x60] sm:$0xff]
    %v79 = vld [vmem:[#allocation6 + $0x68] sm:$0xff]
    %v80 = vld [vmem:[#allocation6 + $0x70] sm:$0xff]
    %v81 = vld [vmem:[#allocation6 + $0x78] sm:$0xff]
    %82 = vmatprep.subr.mxu0 0.0
    %83 = vmatpush1.msra.mxu0 %v66
    %84 = vmatprep.subr.mxu0 0.0
    %85 = vmatpush1.msra.mxu0 %v67
    %86 = vmatprep.subr.mxu0 0.0
    %87 = vmatpush1.msra.mxu0 %v68
    %88 = vmatprep.subr.mxu0 0.0
    %89 = vmatpush1.msra.mxu0 %v69
    %90 = vmatprep.subr.mxu0 0.0
    %91 = vmatpush1.msra.mxu0 %v70
    %92 = vmatprep.subr.mxu0 0.0
    %93 = vmatpush1.msra.mxu0 %v71
    %94 = vmatprep.subr.mxu0 0.0
    %95 = vmatpush1.msra.mxu0 %v72
    %96 = vmatprep.subr.mxu0 0.0
    %97 = vmatpush1.msra.mxu0 %v73
    %98 = vmatprep.subr.mxu0 0.0
    %99 = vmatpush1.msra.mxu0 %v74
    %100 = vmatprep.subr.mxu0 0.0
    %101 = vmatpush1.msra.mxu0 %v75
    %102 = vmatprep.subr.mxu0 0.0
    %103 = vmatpush1.msra.mxu0 %v76
    %104 = vmatprep.subr.mxu0 0.0
    %105 = vmatpush1.msra.mxu0 %v77
    %106 = vmatprep.subr.mxu0 0.0
    %107 = vmatpush1.msra.mxu0 %v78
    %108 = vmatprep.subr.mxu0 0.0
    %109 = vmatpush1.msra.mxu0 %v79
    %110 = vmatprep.subr.mxu0 0.0
    %111 = vmatpush1.msra.mxu0 %v80
    %112 = vmatprep.subr.mxu0 0.0
    %113 = vmatpush1.msra.mxu0 %v81
    %114 = vmatprep.subr.mxu0 0.0
    %115 = vmatpush1.msra.mxu0 0.0
    %116 = vmatprep.subr.mxu0 0.0
    %117 = vmatpush1.msra.mxu0 0.0
    %118 = vmatprep.subr.mxu0 0.0
    %119 = vmatpush1.msra.mxu0 0.0
    %120 = vmatprep.subr.mxu0 0.0
    %121 = vmatpush1.msra.mxu0 0.0
    %122 = vmatprep.subr.mxu0 0.0
    %123 = vmatpush1.msra.mxu0 0.0
    %124 = vmatprep.subr.mxu0 0.0
    %125 = vmatpush1.msra.mxu0 0.0
    %126 = vmatprep.subr.mxu0 0.0
    %127 = vmatpush1.msra.mxu0 0.0
    %128 = vmatprep.subr.mxu0 0.0
    %129 = vmatpush1.msra.mxu0 0.0
    %130 = vmatprep.subr.mxu0 0.0
    %131 = vmatpush1.msra.mxu0 0.0
    %132 = vmatprep.subr.mxu0 0.0
    %133 = vmatpush1.msra.mxu0 0.0
    %134 = vmatprep.subr.mxu0 0.0
    %135 = vmatpush1.msra.mxu0 0.0
    %136 = vmatprep.subr.mxu0 0.0
    %137 = vmatpush1.msra.mxu0 0.0
    %138 = vmatprep.subr.mxu0 0.0
    %139 = vmatpush1.msra.mxu0 0.0
    %140 = vmatprep.subr.mxu0 0.0
    %141 = vmatpush1.msra.mxu0 0.0
    %142 = vmatprep.subr.mxu0 0.0
    %143 = vmatpush1.msra.mxu0 0.0
    %144 = vmatprep.subr.mxu0 0.0
    %145 = vmatpush1.msra.mxu0 0.0
    %146 = vmatprep.mubr.f32.mxu0 0.0
    %147 = vmatmul.mubr.f32.gmra.mrb[0].mxu0 %v65
    %v148 = vpop.f32.mrb[0].mxu0
    %v149 = vadd.f32 0.0, %v148
    %v150 = vpop.f32.mrb[0].mxu0
    %151 = vdwg.mxu0
    %v152 = vrot.slane %v149, 4
    %v153 = vadd.f32 %v149, %v152
    %v154 = vrot.slane %v153, 2
    %v155 = vadd.f32 %v153, %v154
    %v156 = vrot.slane %v155, 1
    %v157 = vadd.f32 %v155, %v156
    %v158 = vmul.f32 %v157, 0.125
    %v159 = vmul.f32 %v149, %v149
    %v160 = vrot.slane %v159, 4
    %v161 = vadd.f32 %v159, %v160
    %v162 = vrot.slane %v161, 2
    %v163 = vadd.f32 %v161, %v162
    %v164 = vrot.slane %v163, 1
    %v165 = vadd.f32 %v163, %v164
    %v166 = vmul.f32 %v165, 0.125
    %v167 = vmul.f32 %v158, %v158
    %v168 = vsub.f32 %v166, %v167
    %v169 = vmax.f32 %v168, 0.0
    %v170 = vld [vmem:[%s2] sm:$0x1]
    %v171 = vadd.f32 %v169, 1e-05
    %v172 = vrsqrt.pop %v171
    %v173 = vmul.f32 %v170, %v172
    %v174 = vld [vmem:[%s2 + $0x1] sm:$0x1]
    %v175 = vmul.f32 %v158, %v173
    %v176 = vsub.f32 %v174, %v175
    %v177 = vlaneseq
    %v178 = vshrl.u32 %v177, 7
    %v179 = vsub.s32 0, %v178
    %v180 = vrot.slane %v173, %v179
    %v181 = vmul.f32 %v149, %v180
    %v182 = vlaneseq
    %v183 = vshrl.u32 %v182, 7
    %v184 = vsub.s32 0, %v183
    %v185 = vrot.slane %v176, %v184
    %v186 = vadd.f32 %v181, %v185
    %v187 = vmax.f32 %v186, 0.0
    %v188 = vld [vmem:[#allocation2] sm:$0xff]
    %v189 = vld [vmem:[#allocation8] sm:$0xff]
    %v190 = vld [vmem:[#allocation8 + $0x8] sm:$0xff]
    %v191 = vld [vmem:[#allocation8 + $0x10] sm:$0xff]
    %v192 = vld [vmem:[#allocation8 + $0x18] sm:$0xff]
    %v193 = vld [vmem:[#allocation8 + $0x20] sm:$0xff]
    %v194 = vld [vmem:[#allocation8 + $0x28] sm:$0xff]
    %v195 = vld [vmem:[#allocation8 + $0x30] sm:$0xff]
    %v196 = vld [vmem:[#allocation8 + $0x38] sm:$0xff]
    %v197 = vld [vmem:[#allocation8 + $0x40] sm:$0xff]
    %v198 = vld [vmem:[#allocation8 + $0x48] sm:$0xff]
    %v199 = vld [vmem:[#allocation8 + $0x50] sm:$0xff]
    %v200 = vld [vmem:[#allocation8 + $0x58] sm:$0xff]
    %v201 = vld [vmem:[#allocation8 + $0x60] sm:$0xff]
    %v202 = vld [vmem:[#allocation8 + $0x68] sm:$0xff]
    %v203 = vld [vmem:[#allocation8 + $0x70] sm:$0xff]
    %v204 = vld [vmem:[#allocation8 + $0x78] sm:$0xff]
    %205 = vmatprep.subr.mxu0 0.0
    %206 = vmatpush1.msra.mxu0 %v189
    %207 = vmatprep.subr.mxu0 0.0
    %208 = vmatpush1.msra.mxu0 %v190
    %209 = vmatprep.subr.mxu0 0.0
    %210 = vmatpush1.msra.mxu0 %v191
    %211 = vmatprep.subr.mxu0 0.0
    %212 = vmatpush1.msra.mxu0 %v192
    %213 = vmatprep.subr.mxu0 0.0
    %214 = vmatpush1.msra.mxu0 %v193
    %215 = vmatprep.subr.mxu0 0.0
    %216 = vmatpush1.msra.mxu0 %v194
    %217 = vmatprep.subr.mxu0 0.0
    %218 = vmatpush1.msra.mxu0 %v195
    %219 = vmatprep.subr.mxu0 0.0
    %220 = vmatpush1.msra.mxu0 %v196
    %221 = vmatprep.subr.mxu0 0.0
    %222 = vmatpush1.msra.mxu0 %v197
    %223 = vmatprep.subr.mxu0 0.0
    %224 = vmatpush1.msra.mxu0 %v198
    %225 = vmatprep.subr.mxu0 0.0
    %226 = vmatpush1.msra.mxu0 %v199
    %227 = vmatprep.subr.mxu0 0.0
    %228 = vmatpush1.msra.mxu0 %v200
    %229 = vmatprep.subr.mxu0 0.0
    %230 = vmatpush1.msra.mxu0 %v201
    %231 = vmatprep.subr.mxu0 0.0
    %232 = vmatpush1.msra.mxu0 %v202
    %233 = vmatprep.subr.mxu0 0.0
    %234 = vmatpush1.msra.mxu0 %v203
    %235 = vmatprep.subr.mxu0 0.0
    %236 = vmatpush1.msra.mxu0 %v204
    %237 = vmatprep.subr.mxu0 0.0
    %238 = vmatpush1.msra.mxu0 0.0
    %239 = vmatprep.subr.mxu0 0.0
    %240 = vmatpush1.msra.mxu0 0.0
    %241 = vmatprep.subr.mxu0 0.0
    %242 = vmatpush1.msra.mxu0 0.0
    %243 = vmatprep.subr.mxu0 0.0
    %244 = vmatpush1.msra.mxu0 0.0
    %245 = vmatprep.subr.mxu0 0.0
    %246 = vmatpush1.msra.mxu0 0.0
    %247 = vmatprep.subr.mxu0 0.0
    %248 = vmatpush1.msra.mxu0 0.0
    %249 = vmatprep.subr.mxu0 0.0
    %250 = vmatpush1.msra.mxu0 0.0
    %251 = vmatprep.subr.mxu0 0.0
    %252 = vmatpush1.msra.mxu0 0.0
    %253 = vmatprep.subr.mxu0 0.0
    %254 = vmatpush1.msra.mxu0 0.0
    %255 = vmatprep.subr.mxu0 0.0
    %256 = vmatpush1.msra.mxu0 0.0
    %257 = vmatprep.subr.mxu0 0.0
    %258 = vmatpush1.msra.mxu0 0.0
    %259 = vmatprep.subr.mxu0 0.0
    %260 = vmatpush1.msra.mxu0 0.0
    %261 = vmatprep.subr.mxu0 0.0
    %262 = vmatpush1.msra.mxu0 0.0
    %263 = vmatprep.subr.mxu0 0.0
    %264 = vmatpush1.msra.mxu0 0.0
    %265 = vmatprep.subr.mxu0 0.0
    %266 = vmatpush1.msra.mxu0 0.0
    %267 = vmatprep.subr.mxu0 0.0
    %268 = vmatpush1.msra.mxu0 0.0
    %269 = vmatprep.mubr.f32.mxu0 0.0
    %270 = vmatmul.mubr.f32.gmra.mrb[0].mxu0 %v187
    %v271 = vpop.f32.mrb[0].mxu0
    %v272 = vadd.f32 0.0, %v271
    %v273 = vpop.f32.mrb[0].mxu0
    %274 = vdwg.mxu0
    %v275 = vadd.f32 %v188, %v272
    %276 = vst [vmem:[#allocation2] sm:$0xff] %v275
    // Predicated region
    $region38: #{tpu_custom_call.1} parent=1 // pred_check
      %p277 = pneg %p60
    $region39: #{tpu_custom_call.1} parent=1 // pred_check_branch
      %279 = sbr.rel (%p277) target = $region41
    $region40: #{tpu_custom_call.1} parent=1 // pred_region
      %v280 = vld [vmem:[#allocation2] sm:$0xff]
      %v281 = vrot.slane %v280, 4
      %v282 = vadd.f32 %v280, %v281
      %v283 = vrot.slane %v282, 2
      %v284 = vadd.f32 %v282, %v283
      %v285 = vrot.slane %v284, 1
      %v286 = vadd.f32 %v284, %v285
      %v287 = vmul.f32 %v286, 0.125
      %v288 = vmul.f32 %v280, %v280
      %v289 = vrot.slane %v288, 4
      %v290 = vadd.f32 %v288, %v289
      %v291 = vrot.slane %v290, 2
      %v292 = vadd.f32 %v290, %v291
      %v293 = vrot.slane %v292, 1
      %v294 = vadd.f32 %v292, %v293
      %v295 = vmul.f32 %v294, 0.125
      %v296 = vmul.f32 %v287, %v287
      %v297 = vsub.f32 %v295, %v296
      %v298 = vmax.f32 %v297, 0.0
      %v299 = vld [vmem:[%s4] sm:$0x1]
      %v300 = vadd.f32 %v298, 1e-05
      %v301 = vrsqrt.pop %v300
      %v302 = vmul.f32 %v299, %v301
      %v303 = vld [vmem:[%s4 + $0x1] sm:$0x1]
      %v304 = vmul.f32 %v287, %v302
      %v305 = vsub.f32 %v303, %v304
      %v306 = vlaneseq
      %v307 = vshrl.u32 %v306, 7
      %v308 = vsub.s32 0, %v307
      %v309 = vrot.slane %v302, %v308
      %v310 = vmul.f32 %v280, %v309
      %v311 = vlaneseq
      %v312 = vshrl.u32 %v311, 7
      %v313 = vsub.s32 0, %v312
      %v314 = vrot.slane %v305, %v313
      %v315 = vadd.f32 %v310, %v314
      %316 = vst [vmem:[#allocation9] sm:$0xff] %v315
    $region41: #{tpu_custom_call.1} parent=1 // pred_fallthru
      _
    // Predicated region
    $region42: #{tpu_custom_call.1} parent=1 // pred_check
      _
    $region43: #{tpu_custom_call.1} parent=1 // pred_check_branch
      %318 = sbr.rel (0) target = $region45
    $region44: #{tpu_custom_call.1} parent=1 // pred_region
      %s320 = ssub.s32 128, 128
      %321 = vsyncadd [#allocation5], %s320
      %s323 = sshll.u32 [#allocation9], 4
      %s324 = int_to_ptr.vmem [resolvable:$true] %s323
      %326 = dma.vmem_to_hbm [thread:$0]  %s324, 128, %s5, [#allocation5]
    $region45: #{tpu_custom_call.1} parent=1 // pred_fallthru
      _
    // Predicated region
    $region46: #{tpu_custom_call.1} parent=1 // pred_check
      _
    $region47: #{tpu_custom_call.1} parent=1 // pred_check_branch
      %328 = sbr.rel (0) target = $region49
    $region48: #{tpu_custom_call.1} parent=1 // pred_region
      %329 = dma.done [#allocation5], 128
    $region49: #{tpu_custom_call.1} parent=1 // pred_fallthru
      _
    %330 = vsyncpa [#allocation4], 1
    %331 = vsyncpa [#allocation7], 1
    %332 = vsyncpa [#allocation5], 1

</llo_original>
